<compile_context>
chip_gen: v6e
topology: v6e:2x2x1
jax: 0.10.0
libtpu: 0.0.40
codegen_flags: <defaults>
</compile_context>

<pallas_src>
import functools
import math

import jax
import jax.numpy as jnp
from jax.experimental import pallas as pl
from jax.experimental.pallas import tpu as pltpu


# --------------------------------------------------------------------------
# Pallas kernel: one grid step = one lane-dense MXU dot.
# --------------------------------------------------------------------------
def _relpos2d_kernel(q_ref, w_ref, o_ref):
    # q_ref : (bh_t*L, 2*L*d)  bf16   row (bh, x1) = [q[bh,x1,:,:] | q[bh,:,x1,:]]
    # w_ref : (2*L*d, L*T)     bf16   block-diagonal, expansion-folded weights
    # o_ref : (bh_t*L, L*T)    f32    row (bh, x1); col = y1*T + x2*L + y2
    o_ref[...] = jnp.dot(
        q_ref[...], w_ref[...], preferred_element_type=jnp.float32
    ).astype(o_ref.dtype)


# --------------------------------------------------------------------------
# Helpers
# --------------------------------------------------------------------------
def _round_up(x, m):
    return (x + m - 1) // m * m


def _hw_params():
    """(vmem_capacity_bytes, tensorcores_per_chip) with safe fallbacks."""
    vmem = 64 * 1024 * 1024  # conservative default (v7x per-TC); v5e/v6e have 128 MiB
    cores = 1
    try:
        info = pltpu.get_tpu_info()
        for name in ("vmem_capacity_bytes", "vmem_size_bytes", "vmem_bytes"):
            v = getattr(info, name, None)
            if v:
                vmem = int(v)
                break
    except Exception:
        pass
    try:
        kind = jax.devices()[0].device_kind.lower()
        if "v7" in kind or "7x" in kind:
            cores = 2  # v7x: 2 TensorCores per chip (megacore)
    except Exception:
        pass
    return vmem, cores


def _pick_bh_tile(bh, L, d, budget_bytes, cores):
    """Largest (b*heads) tile whose per-step buffers fit the VMEM budget.

    All blocks are lane-dense, so the estimate is essentially exact:
      q block   : (t*L, 2*L*d) bf16, double-buffered
      out block : (t*L, L*T)   f32,  double-buffered
      weight    : (2*L*d, L*T) bf16, resident (counted double-buffered anyway)
    """
    K = 2 * L * d
    N = L * L * L  # = L*T

    def step_bytes(t):
        m = _round_up(t * L, 8)
        q_b = 2 * m * _round_up(K, 128) * 2
        o_b = 2 * m * _round_up(N, 128) * 4
        w_b = 2 * _round_up(K, 8) * _round_up(N, 128) * 2
        return q_b + o_b + w_b

    t = 1
    while t < bh and step_bytes(min(2 * t, bh)) <= budget_bytes:
        t = min(2 * t, bh)

    if cores >= 2 and bh >= 2:
        # Keep an (even) number of grid blocks >= #TensorCores so megacore
        # sharding stays balanced; on 1-TC chips this cap is skipped.
        n_blocks = _round_up(pl.cdiv(bh, t), cores)
        t = pl.cdiv(bh, n_blocks)

    # Block second-to-last dim (t*L) must be a multiple of 8 when the grid has
    # more than one block (if n_blocks == 1 the block equals the full dim).
    if t < bh:
        mult = 8 // math.gcd(L, 8)
        t = _round_up(t, mult)
    return max(1, min(t, bh))


# --------------------------------------------------------------------------
# Wrapper
# --------------------------------------------------------------------------
def rel_pos_emb_2d(q, rel_w, rel_h, *, feat_map_size):
    """Pallas implementation of RelPosEmb2D.forward (shared-heads embedding)."""
    fh, fw = feat_map_size
    b, heads, tokens, d = q.shape
    assert tokens == fh * fw, "tokens must equal fh*fw"
    # The original module's relative_to_absolute only type-checks for square maps.
    assert fh == fw, "RelPosEmb2D requires a square feature map (h == w)"
    L = fw
    T = L * L
    BH = b * heads
    K = 2 * L * d
    N = L * T

    # ---- parameter-sized prep in XLA (tiny) --------------------------------
    # Shift-folded, expansion-folded, block-diagonal weights.
    #   W[branch, y1_in*d + k, y1_out*T + x2*L + y2]
    #     = (y1_in == y1_out) * rel[y2 - y1_out + L - 1, k]
    idx = jnp.arange(L)[None, :] - jnp.arange(L)[:, None] + (L - 1)      # (y1, y2)
    eye = jnp.eye(L, dtype=q.dtype)

    def _fold(rel):
        g = jnp.transpose(rel[idx], (0, 2, 1))        # (L, d, L)   [y1, k, y2]
        g = jnp.tile(g, (1, 1, L))                    # (L, d, T)   [y1, k, x2*L+y2]
        w = jnp.einsum('io,okc->ikoc', eye, g)        # (L, d, L, T)
        return w.reshape(L * d, N)

    w_cat = jnp.concatenate([_fold(rel_w), _fold(rel_h)], axis=0)         # (2Ld, LT)
    w_cat = w_cat.astype(jnp.bfloat16)

    # q rows: (bh, x1) -> [ q[bh, x1, 0:L, :] | q[bh, 0:L, x1, :] ], lane-dense.
    q5 = q.reshape(BH, L, L, d)
    q_t = jnp.transpose(q5, (0, 2, 1, 3))                                 # x/y swap
    q_cat = jnp.concatenate(
        [q5.reshape(BH, L, L * d), q_t.reshape(BH, L, L * d)], axis=-1
    ).astype(jnp.bfloat16)                                                # (BH, L, 2Ld)

    # ---- tiling -------------------------------------------------------------
    vmem_cap, cores = _hw_params()
    vmem_limit = int(vmem_cap * 0.75)
    if cores >= 2:                       # v7x: 64 MiB physical per TensorCore
        vmem_limit = min(vmem_limit, 48 * 1024 * 1024)
    vmem_limit = max(vmem_limit, 32 * 1024 * 1024)
    budget = vmem_limit - 2 * 1024 * 1024

    bh_t = _pick_bh_tile(BH, L, d, budget, cores)
    n_blocks = pl.cdiv(BH, bh_t)
    BHp = n_blocks * bh_t
    if BHp != BH:                        # pad instead of divisor hunting
        q_cat = jnp.pad(q_cat, ((0, BHp - BH), (0, 0), (0, 0)))
    q_cat = q_cat.reshape(BHp * L, K)

    out2d = pl.pallas_call(
        _relpos2d_kernel,
        out_shape=jax.ShapeDtypeStruct((BHp * L, N), jnp.float32),
        grid_spec=pltpu.PrefetchScalarGridSpec(
            num_scalar_prefetch=0,
            grid=(n_blocks,),
            in_specs=[
                pl.BlockSpec((bh_t * L, K), lambda n: (n, 0)),
                # constant index map -> weight stays VMEM-resident across steps
                pl.BlockSpec((K, N), lambda n: (0, 0)),
            ],
            out_specs=pl.BlockSpec((bh_t * L, N), lambda n: (n, 0)),
        ),
        compiler_params=pltpu.CompilerParams(
            dimension_semantics=("parallel",),
            vmem_limit_bytes=vmem_limit,
        ),
    )(q_cat, w_cat)                                                       # (BHp*L, L*T)

    # Row = bh*L + x1, col = y1*T + x2*L + y2  ->  row-major reshape is free.
    return out2d[: BH * L].reshape(b, heads, T, T)


# --------------------------------------------------------------------------
# Pure-JAX reference mirroring the PyTorch code literally (for verification).
# --------------------------------------------------------------------------
def _relative_to_absolute_ref(x):
    b, h, l, _ = x.shape
    x = jnp.concatenate([x, jnp.zeros((b, h, l, 1), x.dtype)], axis=3)
    flat_x = x.reshape(b, h, l * 2 * l)
    flat_x = jnp.concatenate([flat_x, jnp.zeros((b, h, l - 1), x.dtype)], axis=2)
    final_x = flat_x.reshape(b, h, l + 1, 2 * l - 1)
    return final_x[:, :, :l, l - 1:]


def _rel_pos_emb_1d_ref(q, rel_emb):
    emb = jnp.einsum('bhtd,rd->bhtr', q, rel_emb)
    return _relative_to_absolute_ref(emb)


def _expand_emb_ref(r, dim_size):
    bb, hx, i, j = r.shape
    hh = hx // dim_size
    r = r.reshape(bb, hh, dim_size, 1, i, j)
    r = jnp.broadcast_to(r, (bb, hh, dim_size, dim_size, i, j))
    r = jnp.transpose(r, (0, 1, 2, 4, 3, 5))       # b h x1 y1 x2 y2
    return r.reshape(bb, hh, dim_size * i, dim_size * j)


def rel_pos_emb_2d_ref(q, rel_w, rel_h, feat_map_size):
    fh, fw = feat_map_size
    b, heads, _, d = q.shape
    q5 = q.reshape(b, heads, fh, fw, d)
    qh = q5.reshape(b, heads * fh, fw, d)                                  # b (h x) y d
    qw = jnp.transpose(q5, (0, 1, 3, 2, 4)).reshape(b, heads * fw, fh, d)  # b (h y) x d
    r_h = _rel_pos_emb_1d_ref(qh, rel_w)    # emb_w
    r_w = _rel_pos_emb_1d_ref(qw, rel_h)    # emb_h
    return _expand_emb_ref(r_h, fh) + _expand_emb_ref(r_w, fh)


if __name__ == "__main__":
    batch, heads, fh, fw, dim_head = 2, 4, 8, 8, 32
    key = jax.random.PRNGKey(0)
    kq, kw, kh = jax.random.split(key, 3)

    # Deterministic inputs / parameters (RelPosEmb1D: randn(2*tokens-1, d) * d**-0.5,
    # shared-heads branch, since heads=None in the module default).
    q = jax.random.normal(kq, (batch, heads, fh * fw, dim_head), jnp.float32)
    scale = dim_head ** -0.5
    rel_w = jax.random.normal(kw, (2 * fh - 1, dim_head), jnp.float32) * scale  # emb_w
    rel_h = jax.random.normal(kh, (2 * fw - 1, dim_head), jnp.float32) * scale  # emb_h

    fn = jax.jit(functools.partial(rel_pos_emb_2d, feat_map_size=(fh, fw)))
    out = jax.block_until_ready(fn(q, rel_w, rel_h))

    ref = rel_pos_emb_2d_ref(q, rel_w, rel_h, (fh, fw))
    assert out.shape == (batch, heads, fh * fw, fh * fw), out.shape
    # bf16 matmul inputs (f32 accumulation) -> slightly looser tolerance than f32.
    assert jnp.allclose(out, ref, rtol=3e-2, atol=3e-2), float(jnp.max(jnp.abs(out - ref)))
    print("KERNEL_OK")
</pallas_src>

<mosaic_0001>
module attributes {stable_mosaic.version = 11 : i64} {
  func.func @_relpos2d_kernel(%arg0: i32, %arg1: memref<64x512xbf16, #tpu.memory_space<vmem>>, %arg2: memref<512x512xbf16, #tpu.memory_space<vmem>>, %arg3: memref<64x512xf32, #tpu.memory_space<vmem>>) attributes {dimension_semantics = [#tpu.dimension_semantics<parallel>], iteration_bounds = array<i64: 1>, scalar_prefetch = 0 : i64, scratch_operands = 0 : i64, tpu.core_type = #tpu.core_type<tc>, window_params = [{transform_indices = @transform_0, window_bounds = array<i64: 64, 512>}, {pipeline_mode = #tpu.pipeline_mode<synchronous>, transform_indices = @transform_1, window_bounds = array<i64: 512, 512>}, {transform_indices = @transform_2, window_bounds = array<i64: 64, 512>}]} {
    %c0 = arith.constant 0 : index
    %c0_0 = arith.constant 0 : index
    %0 = vector.load %arg1[%c0, %c0_0] : memref<64x512xbf16, #tpu.memory_space<vmem>>, vector<64x512xbf16>
    %c0_1 = arith.constant 0 : index
    %c0_2 = arith.constant 0 : index
    %1 = vector.load %arg2[%c0_1, %c0_2] : memref<512x512xbf16, #tpu.memory_space<vmem>>, vector<512x512xbf16>
    %cst = arith.constant dense<0.000000e+00> : vector<64x512xf32>
    %2 = tpu.matmul %0, %1, %cst {dimension_numbers = #tpu.dot_dimension_numbers<[1], [0], [0], [1], [0, 0, 1, 1], [], []>} : vector<64x512xbf16>, vector<512x512xbf16>, vector<64x512xf32> -> vector<64x512xf32>
    %c0_3 = arith.constant 0 : index
    %c0_4 = arith.constant 0 : index
    %3 = vector.load %arg3[%c0_3, %c0_4] : memref<64x512xf32, #tpu.memory_space<vmem>>, vector<64x512xf32>
    tpu.vector_store %arg3[%c0_3, %c0_4], %2 {strides = array<i32>} : memref<64x512xf32, #tpu.memory_space<vmem>>, vector<64x512xf32>,
    return
  }
  func.func @transform_0(%arg0: i32) -> (i32, i32) {
    %c0_i32 = arith.constant 0 : i32
    %c0_i32_0 = arith.constant 0 : i32
    return %arg0, %c0_i32 : i32, i32
  }
  func.func @transform_1(%arg0: i32) -> (i32, i32) {
    %c0_i32 = arith.constant 0 : i32
    %c0_i32_0 = arith.constant 0 : i32
    %c0_i32_1 = arith.constant 0 : i32
    return %c0_i32, %c0_i32_0 : i32, i32
  }
  func.func @transform_2(%arg0: i32) -> (i32, i32) {
    %c0_i32 = arith.constant 0 : i32
    %c0_i32_0 = arith.constant 0 : i32
    return %arg0, %c0_i32 : i32, i32
  }
}

</mosaic_0001>

<llo_original>
// kernel: rel_pos_emb_2d.1
$region0: #{rel_pos_emb_2d.1}
  #allocation0 [shape = 'u32[]', space=smem, size = 0x4, offset = 0x4, fixed_abs, tag = 'smem constant byte address 0x4 - core index']
  #allocation1 [shape = 'u32[144,128]{1,0:T(1,128)}', space=vmem, size = 0x12000, scoped, tag = 'internal scratch']
  %s0 = inlined_call_operand.vmem [shape: bf16[64,512], index: 0, kind: input, shape index: {}]
  %s1 = inlined_call_operand.vmem [shape: bf16[512,512], index: 1, kind: input, shape index: {}]
  %s2 = inlined_call_operand.vmem [shape: f32[64,512], index: 2, kind: output, shape index: {}]
  %s3 = sld [smem:[#allocation0]]
  $region18: #{rel_pos_emb_2d.1} parent=0
    _
  %s5 = ssub.s32 1, %s3
  %s6 = scalar_select 0, %s5, %s3
  // Predicated region
  $region2: #{rel_pos_emb_2d.1} parent=0 // pred_check
    _
  $region3: #{rel_pos_emb_2d.1} parent=0 // pred_check_branch
    %8 = sbr.rel (0) target = $region5
  $region4: #{rel_pos_emb_2d.1} parent=0 // pred_region
    _
  $region5: #{rel_pos_emb_2d.1} parent=0 // pred_fallthru
    _
  // Predicated region
  $region6: #{rel_pos_emb_2d.1} parent=0 // pred_check
    _
  $region7: #{rel_pos_emb_2d.1} parent=0 // pred_check_branch
    %10 = sbr.rel (0) target = $region9
  $region8: #{rel_pos_emb_2d.1} parent=0 // pred_region
    _
  $region9: #{rel_pos_emb_2d.1} parent=0 // pred_fallthru
    _
  %v11 = vld [vmem:[%s0] sm:$0xff]
  %v12 = vld [vmem:[%s0 + $0x8] sm:$0xff]
  %v13 = vld [vmem:[%s0 + $0x10] sm:$0xff]
  %v14 = vld [vmem:[%s0 + $0x18] sm:$0xff]
  %v15 = vld [vmem:[%s0 + $0x20] sm:$0xff]
  %v16 = vld [vmem:[%s0 + $0x28] sm:$0xff]
  %v17 = vld [vmem:[%s0 + $0x30] sm:$0xff]
  %v18 = vld [vmem:[%s0 + $0x38] sm:$0xff]
  %v19 = vld [vmem:[%s0 + $0x40] sm:$0xff]
  %v20 = vld [vmem:[%s0 + $0x48] sm:$0xff]
  %v21 = vld [vmem:[%s0 + $0x50] sm:$0xff]
  %v22 = vld [vmem:[%s0 + $0x58] sm:$0xff]
  %v23 = vld [vmem:[%s0 + $0x60] sm:$0xff]
  %v24 = vld [vmem:[%s0 + $0x68] sm:$0xff]
  %v25 = vld [vmem:[%s0 + $0x70] sm:$0xff]
  %v26 = vld [vmem:[%s0 + $0x78] sm:$0xff]
  %v27 = vld [vmem:[%s1] sm:$0xff]
  %v28 = vld [vmem:[%s1 + $0x8] sm:$0xff]
  %v29 = vld [vmem:[%s1 + $0x10] sm:$0xff]
  %v30 = vld [vmem:[%s1 + $0x18] sm:$0xff]
  %v31 = vld [vmem:[%s1 + $0x20] sm:$0xff]
  %v32 = vld [vmem:[%s1 + $0x28] sm:$0xff]
  %v33 = vld [vmem:[%s1 + $0x30] sm:$0xff]
  %v34 = vld [vmem:[%s1 + $0x38] sm:$0xff]
  %v35 = vld [vmem:[%s1 + $0x40] sm:$0xff]
  %v36 = vld [vmem:[%s1 + $0x48] sm:$0xff]
  %v37 = vld [vmem:[%s1 + $0x50] sm:$0xff]
  %v38 = vld [vmem:[%s1 + $0x58] sm:$0xff]
  %v39 = vld [vmem:[%s1 + $0x60] sm:$0xff]
  %v40 = vld [vmem:[%s1 + $0x68] sm:$0xff]
  %v41 = vld [vmem:[%s1 + $0x70] sm:$0xff]
  %v42 = vld [vmem:[%s1 + $0x78] sm:$0xff]
  %v43 = vld [vmem:[%s1 + $0x80] sm:$0xff]
  %v44 = vld [vmem:[%s1 + $0x88] sm:$0xff]
  %v45 = vld [vmem:[%s1 + $0x90] sm:$0xff]
  %v46 = vld [vmem:[%s1 + $0x98] sm:$0xff]
  %v47 = vld [vmem:[%s1 + $0xa0] sm:$0xff]
  %v48 = vld [vmem:[%s1 + $0xa8] sm:$0xff]
  %v49 = vld [vmem:[%s1 + $0xb0] sm:$0xff]
  %v50 = vld [vmem:[%s1 + $0xb8] sm:$0xff]
  %v51 = vld [vmem:[%s1 + $0xc0] sm:$0xff]
  %v52 = vld [vmem:[%s1 + $0xc8] sm:$0xff]
  %v53 = vld [vmem:[%s1 + $0xd0] sm:$0xff]
  %v54 = vld [vmem:[%s1 + $0xd8] sm:$0xff]
  %v55 = vld [vmem:[%s1 + $0xe0] sm:$0xff]
  %v56 = vld [vmem:[%s1 + $0xe8] sm:$0xff]
  %v57 = vld [vmem:[%s1 + $0xf0] sm:$0xff]
  %v58 = vld [vmem:[%s1 + $0xf8] sm:$0xff]
  %v59 = vld [vmem:[%s1 + $0x100] sm:$0xff]
  %v60 = vld [vmem:[%s1 + $0x108] sm:$0xff]
  %v61 = vld [vmem:[%s1 + $0x110] sm:$0xff]
  %v62 = vld [vmem:[%s1 + $0x118] sm:$0xff]
  %v63 = vld [vmem:[%s1 + $0x120] sm:$0xff]
  %v64 = vld [vmem:[%s1 + $0x128] sm:$0xff]
  %v65 = vld [vmem:[%s1 + $0x130] sm:$0xff]
  %v66 = vld [vmem:[%s1 + $0x138] sm:$0xff]
  %v67 = vld [vmem:[%s1 + $0x140] sm:$0xff]
  %v68 = vld [vmem:[%s1 + $0x148] sm:$0xff]
  %v69 = vld [vmem:[%s1 + $0x150] sm:$0xff]
  %v70 = vld [vmem:[%s1 + $0x158] sm:$0xff]
  %v71 = vld [vmem:[%s1 + $0x160] sm:$0xff]
  %v72 = vld [vmem:[%s1 + $0x168] sm:$0xff]
  %v73 = vld [vmem:[%s1 + $0x170] sm:$0xff]
  %v74 = vld [vmem:[%s1 + $0x178] sm:$0xff]
  %v75 = vld [vmem:[%s1 + $0x180] sm:$0xff]
  %v76 = vld [vmem:[%s1 + $0x188] sm:$0xff]
  %v77 = vld [vmem:[%s1 + $0x190] sm:$0xff]
  %v78 = vld [vmem:[%s1 + $0x198] sm:$0xff]
  %v79 = vld [vmem:[%s1 + $0x1a0] sm:$0xff]
  %v80 = vld [vmem:[%s1 + $0x1a8] sm:$0xff]
  %v81 = vld [vmem:[%s1 + $0x1b0] sm:$0xff]
  %v82 = vld [vmem:[%s1 + $0x1b8] sm:$0xff]
  %v83 = vld [vmem:[%s1 + $0x1c0] sm:$0xff]
  %v84 = vld [vmem:[%s1 + $0x1c8] sm:$0xff]
  %v85 = vld [vmem:[%s1 + $0x1d0] sm:$0xff]
  %v86 = vld [vmem:[%s1 + $0x1d8] sm:$0xff]
  %v87 = vld [vmem:[%s1 + $0x1e0] sm:$0xff]
  %v88 = vld [vmem:[%s1 + $0x1e8] sm:$0xff]
  %v89 = vld [vmem:[%s1 + $0x1f0] sm:$0xff]
  %v90 = vld [vmem:[%s1 + $0x1f8] sm:$0xff]
  %v91 = vld [vmem:[%s1 + $0x200] sm:$0xff]
  %v92 = vld [vmem:[%s1 + $0x208] sm:$0xff]
  %v93 = vld [vmem:[%s1 + $0x210] sm:$0xff]
  %v94 = vld [vmem:[%s1 + $0x218] sm:$0xff]
  %v95 = vld [vmem:[%s1 + $0x220] sm:$0xff]
  %v96 = vld [vmem:[%s1 + $0x228] sm:$0xff]
  %v97 = vld [vmem:[%s1 + $0x230] sm:$0xff]
  %v98 = vld [vmem:[%s1 + $0x238] sm:$0xff]
  %v99 = vld [vmem:[%s1 + $0x240] sm:$0xff]
  %v100 = vld [vmem:[%s1 + $0x248] sm:$0xff]
  %v101 = vld [vmem:[%s1 + $0x250] sm:$0xff]
  %v102 = vld [vmem:[%s1 + $0x258] sm:$0xff]
  %v103 = vld [vmem:[%s1 + $0x260] sm:$0xff]
  %v104 = vld [vmem:[%s1 + $0x268] sm:$0xff]
  %v105 = vld [vmem:[%s1 + $0x270] sm:$0xff]
  %v106 = vld [vmem:[%s1 + $0x278] sm:$0xff]
  %v107 = vld [vmem:[%s1 + $0x280] sm:$0xff]
  %v108 = vld [vmem:[%s1 + $0x288] sm:$0xff]
  %v109 = vld [vmem:[%s1 + $0x290] sm:$0xff]
  %v110 = vld [vmem:[%s1 + $0x298] sm:$0xff]
  %v111 = vld [vmem:[%s1 + $0x2a0] sm:$0xff]
  %v112 = vld [vmem:[%s1 + $0x2a8] sm:$0xff]
  %v113 = vld [vmem:[%s1 + $0x2b0] sm:$0xff]
  %v114 = vld [vmem:[%s1 + $0x2b8] sm:$0xff]
  %v115 = vld [vmem:[%s1 + $0x2c0] sm:$0xff]
  %v116 = vld [vmem:[%s1 + $0x2c8] sm:$0xff]
  %v117 = vld [vmem:[%s1 + $0x2d0] sm:$0xff]
  %v118 = vld [vmem:[%s1 + $0x2d8] sm:$0xff]
  %v119 = vld [vmem:[%s1 + $0x2e0] sm:$0xff]
  %v120 = vld [vmem:[%s1 + $0x2e8] sm:$0xff]
  %v121 = vld [vmem:[%s1 + $0x2f0] sm:$0xff]
  %v122 = vld [vmem:[%s1 + $0x2f8] sm:$0xff]
  %v123 = vld [vmem:[%s1 + $0x300] sm:$0xff]
  %v124 = vld [vmem:[%s1 + $0x308] sm:$0xff]
  %v125 = vld [vmem:[%s1 + $0x310] sm:$0xff]
  %v126 = vld [vmem:[%s1 + $0x318] sm:$0xff]
  %v127 = vld [vmem:[%s1 + $0x320] sm:$0xff]
  %v128 = vld [vmem:[%s1 + $0x328] sm:$0xff]
  %v129 = vld [vmem:[%s1 + $0x330] sm:$0xff]
  %v130 = vld [vmem:[%s1 + $0x338] sm:$0xff]
  %v131 = vld [vmem:[%s1 + $0x340] sm:$0xff]
  %v132 = vld [vmem:[%s1 + $0x348] sm:$0xff]
  %v133 = vld [vmem:[%s1 + $0x350] sm:$0xff]
  %v134 = vld [vmem:[%s1 + $0x358] sm:$0xff]
  %v135 = vld [vmem:[%s1 + $0x360] sm:$0xff]
  %v136 = vld [vmem:[%s1 + $0x368] sm:$0xff]
  %v137 = vld [vmem:[%s1 + $0x370] sm:$0xff]
  %v138 = vld [vmem:[%s1 + $0x378] sm:$0xff]
  %v139 = vld [vmem:[%s1 + $0x380] sm:$0xff]
  %v140 = vld [vmem:[%s1 + $0x388] sm:$0xff]
  %v141 = vld [vmem:[%s1 + $0x390] sm:$0xff]
  %v142 = vld [vmem:[%s1 + $0x398] sm:$0xff]
  %v143 = vld [vmem:[%s1 + $0x3a0] sm:$0xff]
  %v144 = vld [vmem:[%s1 + $0x3a8] sm:$0xff]
  %v145 = vld [vmem:[%s1 + $0x3b0] sm:$0xff]
  %v146 = vld [vmem:[%s1 + $0x3b8] sm:$0xff]
  %v147 = vld [vmem:[%s1 + $0x3c0] sm:$0xff]
  %v148 = vld [vmem:[%s1 + $0x3c8] sm:$0xff]
  %v149 = vld [vmem:[%s1 + $0x3d0] sm:$0xff]
  %v150 = vld [vmem:[%s1 + $0x3d8] sm:$0xff]
  %v151 = vld [vmem:[%s1 + $0x3e0] sm:$0xff]
  %v152 = vld [vmem:[%s1 + $0x3e8] sm:$0xff]
  %v153 = vld [vmem:[%s1 + $0x3f0] sm:$0xff]
  %v154 = vld [vmem:[%s1 + $0x3f8] sm:$0xff]
  %v171 = vunpack.c.l.b16 %v11
  %v172 = vunpack.c.h.b16 %v11
  %v173 = vunpack.c.l.b16 %v12
  %v174 = vunpack.c.h.b16 %v12
  %v175 = vunpack.c.l.b16 %v13
  %v176 = vunpack.c.h.b16 %v13
  %v177 = vunpack.c.l.b16 %v14
  %v178 = vunpack.c.h.b16 %v14
  %v179 = vunpack.c.l.b16 %v15
  %v180 = vunpack.c.h.b16 %v15
  %v181 = vunpack.c.l.b16 %v16
  %v182 = vunpack.c.h.b16 %v16
  %v183 = vunpack.c.l.b16 %v17
  %v184 = vunpack.c.h.b16 %v17
  %v185 = vunpack.c.l.b16 %v18
  %v186 = vunpack.c.h.b16 %v18
  %v187 = vunpack.c.l.b16 %v19
  %v188 = vunpack.c.h.b16 %v19
  %v189 = vunpack.c.l.b16 %v20
  %v190 = vunpack.c.h.b16 %v20
  %v191 = vunpack.c.l.b16 %v21
  %v192 = vunpack.c.h.b16 %v21
  %v193 = vunpack.c.l.b16 %v22
  %v194 = vunpack.c.h.b16 %v22
  %v195 = vunpack.c.l.b16 %v23
  %v196 = vunpack.c.h.b16 %v23
  %v197 = vunpack.c.l.b16 %v24
  %v198 = vunpack.c.h.b16 %v24
  %v199 = vunpack.c.l.b16 %v25
  %v200 = vunpack.c.h.b16 %v25
  %v201 = vunpack.c.l.b16 %v26
  %v202 = vunpack.c.h.b16 %v26
  %v203 = vpack.c.b16 %v175, %v171
  %v204 = vpack.c.b16 %v176, %v172
  %v205 = vpack.c.b16 %v177, %v173
  %v206 = vpack.c.b16 %v178, %v174
  %v207 = vpack.c.b16 %v183, %v179
  %v208 = vpack.c.b16 %v184, %v180
  %v209 = vpack.c.b16 %v185, %v181
  %v210 = vpack.c.b16 %v186, %v182
  %v211 = vpack.c.b16 %v191, %v187
  %v212 = vpack.c.b16 %v192, %v188
  %v213 = vpack.c.b16 %v193, %v189
  %v214 = vpack.c.b16 %v194, %v190
  %v215 = vpack.c.b16 %v199, %v195
  %v216 = vpack.c.b16 %v200, %v196
  %v217 = vpack.c.b16 %v201, %v197
  %v218 = vpack.c.b16 %v202, %v198
  %v363 = vunpack.c.l.b16 %v27
  %v364 = vunpack.c.h.b16 %v27
  %v365 = vunpack.c.l.b16 %v28
  %v366 = vunpack.c.h.b16 %v28
  %v367 = vunpack.c.l.b16 %v29
  %v368 = vunpack.c.h.b16 %v29
  %v369 = vunpack.c.l.b16 %v30
  %v370 = vunpack.c.h.b16 %v30
  %v371 = vunpack.c.l.b16 %v31
  %v372 = vunpack.c.h.b16 %v31
  %v373 = vunpack.c.l.b16 %v32
  %v374 = vunpack.c.h.b16 %v32
  %v375 = vunpack.c.l.b16 %v33
  %v376 = vunpack.c.h.b16 %v33
  %v377 = vunpack.c.l.b16 %v34
  %v378 = vunpack.c.h.b16 %v34
  %v379 = vunpack.c.l.b16 %v35
  %v380 = vunpack.c.h.b16 %v35
  %v381 = vunpack.c.l.b16 %v36
  %v382 = vunpack.c.h.b16 %v36
  %v383 = vunpack.c.l.b16 %v37
  %v384 = vunpack.c.h.b16 %v37
  %v385 = vunpack.c.l.b16 %v38
  %v386 = vunpack.c.h.b16 %v38
  %v387 = vunpack.c.l.b16 %v39
  %v388 = vunpack.c.h.b16 %v39
  %v389 = vunpack.c.l.b16 %v40
  %v390 = vunpack.c.h.b16 %v40
  %v391 = vunpack.c.l.b16 %v41
  %v392 = vunpack.c.h.b16 %v41
  %v393 = vunpack.c.l.b16 %v42
  %v394 = vunpack.c.h.b16 %v42
  %v395 = vunpack.c.l.b16 %v43
  %v396 = vunpack.c.h.b16 %v43
  %v397 = vunpack.c.l.b16 %v44
  %v398 = vunpack.c.h.b16 %v44
  %v399 = vunpack.c.l.b16 %v45
  %v400 = vunpack.c.h.b16 %v45
  %v401 = vunpack.c.l.b16 %v46
  %v402 = vunpack.c.h.b16 %v46
  %v403 = vunpack.c.l.b16 %v47
  %v404 = vunpack.c.h.b16 %v47
  %v405 = vunpack.c.l.b16 %v48
  %v406 = vunpack.c.h.b16 %v48
  %v407 = vunpack.c.l.b16 %v49
  %v408 = vunpack.c.h.b16 %v49
  %v409 = vunpack.c.l.b16 %v50
  %v410 = vunpack.c.h.b16 %v50
  %v411 = vunpack.c.l.b16 %v51
  %v412 = vunpack.c.h.b16 %v51
  %v413 = vunpack.c.l.b16 %v52
  %v414 = vunpack.c.h.b16 %v52
  %v415 = vunpack.c.l.b16 %v53
  %v416 = vunpack.c.h.b16 %v53
  %v417 = vunpack.c.l.b16 %v54
  %v418 = vunpack.c.h.b16 %v54
  %v419 = vunpack.c.l.b16 %v55
  %v420 = vunpack.c.h.b16 %v55
  %v421 = vunpack.c.l.b16 %v56
  %v422 = vunpack.c.h.b16 %v56
  %v423 = vunpack.c.l.b16 %v57
  %v424 = vunpack.c.h.b16 %v57
  %v425 = vunpack.c.l.b16 %v58
  %v426 = vunpack.c.h.b16 %v58
  %v427 = vunpack.c.l.b16 %v59
  %v428 = vunpack.c.h.b16 %v59
  %v429 = vunpack.c.l.b16 %v60
  %v430 = vunpack.c.h.b16 %v60
  %v431 = vunpack.c.l.b16 %v61
  %v432 = vunpack.c.h.b16 %v61
  %v433 = vunpack.c.l.b16 %v62
  %v434 = vunpack.c.h.b16 %v62
  %v435 = vunpack.c.l.b16 %v63
  %v436 = vunpack.c.h.b16 %v63
  %v437 = vunpack.c.l.b16 %v64
  %v438 = vunpack.c.h.b16 %v64
  %v439 = vunpack.c.l.b16 %v65
  %v440 = vunpack.c.h.b16 %v65
  %v441 = vunpack.c.l.b16 %v66
  %v442 = vunpack.c.h.b16 %v66
  %v443 = vunpack.c.l.b16 %v67
  %v444 = vunpack.c.h.b16 %v67
  %v445 = vunpack.c.l.b16 %v68
  %v446 = vunpack.c.h.b16 %v68
  %v447 = vunpack.c.l.b16 %v69
  %v448 = vunpack.c.h.b16 %v69
  %v449 = vunpack.c.l.b16 %v70
  %v450 = vunpack.c.h.b16 %v70
  %v451 = vunpack.c.l.b16 %v71
  %v452 = vunpack.c.h.b16 %v71
  %v453 = vunpack.c.l.b16 %v72
  %v454 = vunpack.c.h.b16 %v72
  %v455 = vunpack.c.l.b16 %v73
  %v456 = vunpack.c.h.b16 %v73
  %v457 = vunpack.c.l.b16 %v74
  %v458 = vunpack.c.h.b16 %v74
  %v459 = vunpack.c.l.b16 %v75
  %v460 = vunpack.c.h.b16 %v75
  %v461 = vunpack.c.l.b16 %v76
  %v462 = vunpack.c.h.b16 %v76
  %v463 = vunpack.c.l.b16 %v77
  %v464 = vunpack.c.h.b16 %v77
  %v465 = vunpack.c.l.b16 %v78
  %v466 = vunpack.c.h.b16 %v78
  %v467 = vunpack.c.l.b16 %v79
  %v468 = vunpack.c.h.b16 %v79
  %v469 = vunpack.c.l.b16 %v80
  %v470 = vunpack.c.h.b16 %v80
  %v471 = vunpack.c.l.b16 %v81
  %v472 = vunpack.c.h.b16 %v81
  %v473 = vunpack.c.l.b16 %v82
  %v474 = vunpack.c.h.b16 %v82
  %v475 = vunpack.c.l.b16 %v83
  %v476 = vunpack.c.h.b16 %v83
  %v477 = vunpack.c.l.b16 %v84
  %v478 = vunpack.c.h.b16 %v84
  %v479 = vunpack.c.l.b16 %v85
  %v480 = vunpack.c.h.b16 %v85
  %v481 = vunpack.c.l.b16 %v86
  %v482 = vunpack.c.h.b16 %v86
  %v483 = vunpack.c.l.b16 %v87
  %v484 = vunpack.c.h.b16 %v87
  %v485 = vunpack.c.l.b16 %v88
  %v486 = vunpack.c.h.b16 %v88
  %v487 = vunpack.c.l.b16 %v89
  %v488 = vunpack.c.h.b16 %v89
  %v489 = vunpack.c.l.b16 %v90
  %v490 = vunpack.c.h.b16 %v90
  %v491 = vunpack.c.l.b16 %v91
  %v492 = vunpack.c.h.b16 %v91
  %v493 = vunpack.c.l.b16 %v92
  %v494 = vunpack.c.h.b16 %v92
  %v495 = vunpack.c.l.b16 %v93
  %v496 = vunpack.c.h.b16 %v93
  %v497 = vunpack.c.l.b16 %v94
  %v498 = vunpack.c.h.b16 %v94
  %v499 = vunpack.c.l.b16 %v95
  %v500 = vunpack.c.h.b16 %v95
  %v501 = vunpack.c.l.b16 %v96
  %v502 = vunpack.c.h.b16 %v96
  %v503 = vunpack.c.l.b16 %v97
  %v504 = vunpack.c.h.b16 %v97
  %v505 = vunpack.c.l.b16 %v98
  %v506 = vunpack.c.h.b16 %v98
  %v507 = vunpack.c.l.b16 %v99
  %v508 = vunpack.c.h.b16 %v99
  %v509 = vunpack.c.l.b16 %v100
  %v510 = vunpack.c.h.b16 %v100
  %v511 = vunpack.c.l.b16 %v101
  %v512 = vunpack.c.h.b16 %v101
  %v513 = vunpack.c.l.b16 %v102
  %v514 = vunpack.c.h.b16 %v102
  %v515 = vunpack.c.l.b16 %v103
  %v516 = vunpack.c.h.b16 %v103
  %v517 = vunpack.c.l.b16 %v104
  %v518 = vunpack.c.h.b16 %v104
  %v519 = vunpack.c.l.b16 %v105
  %v520 = vunpack.c.h.b16 %v105
  %v521 = vunpack.c.l.b16 %v106
  %v522 = vunpack.c.h.b16 %v106
  %v523 = vunpack.c.l.b16 %v107
  %v524 = vunpack.c.h.b16 %v107
  %v525 = vunpack.c.l.b16 %v108
  %v526 = vunpack.c.h.b16 %v108
  %v527 = vunpack.c.l.b16 %v109
  %v528 = vunpack.c.h.b16 %v109
  %v529 = vunpack.c.l.b16 %v110
  %v530 = vunpack.c.h.b16 %v110
  %v531 = vunpack.c.l.b16 %v111
  %v532 = vunpack.c.h.b16 %v111
  %v533 = vunpack.c.l.b16 %v112
  %v534 = vunpack.c.h.b16 %v112
  %v535 = vunpack.c.l.b16 %v113
  %v536 = vunpack.c.h.b16 %v113
  %v537 = vunpack.c.l.b16 %v114
  %v538 = vunpack.c.h.b16 %v114
  %v539 = vunpack.c.l.b16 %v115
  %v540 = vunpack.c.h.b16 %v115
  %v541 = vunpack.c.l.b16 %v116
  %v542 = vunpack.c.h.b16 %v116
  %v543 = vunpack.c.l.b16 %v117
  %v544 = vunpack.c.h.b16 %v117
  %v545 = vunpack.c.l.b16 %v118
  %v546 = vunpack.c.h.b16 %v118
  %v547 = vunpack.c.l.b16 %v119
  %v548 = vunpack.c.h.b16 %v119
  %v549 = vunpack.c.l.b16 %v120
  %v550 = vunpack.c.h.b16 %v120
  %v551 = vunpack.c.l.b16 %v121
  %v552 = vunpack.c.h.b16 %v121
  %v553 = vunpack.c.l.b16 %v122
  %v554 = vunpack.c.h.b16 %v122
  %v555 = vunpack.c.l.b16 %v123
  %v556 = vunpack.c.h.b16 %v123
  %v557 = vunpack.c.l.b16 %v124
  %v558 = vunpack.c.h.b16 %v124
  %v559 = vunpack.c.l.b16 %v125
  %v560 = vunpack.c.h.b16 %v125
  %v561 = vunpack.c.l.b16 %v126
  %v562 = vunpack.c.h.b16 %v126
  %v563 = vunpack.c.l.b16 %v127
  %v564 = vunpack.c.h.b16 %v127
  %v565 = vunpack.c.l.b16 %v128
  %v566 = vunpack.c.h.b16 %v128
  %v567 = vunpack.c.l.b16 %v129
  %v568 = vunpack.c.h.b16 %v129
  %v569 = vunpack.c.l.b16 %v130
  %v570 = vunpack.c.h.b16 %v130
  %v571 = vunpack.c.l.b16 %v131
  %v572 = vunpack.c.h.b16 %v131
  %v573 = vunpack.c.l.b16 %v132
  %v574 = vunpack.c.h.b16 %v132
  %v575 = vunpack.c.l.b16 %v133
  %v576 = vunpack.c.h.b16 %v133
  %v577 = vunpack.c.l.b16 %v134
  %v578 = vunpack.c.h.b16 %v134
  %v579 = vunpack.c.l.b16 %v135
  %v580 = vunpack.c.h.b16 %v135
  %v581 = vunpack.c.l.b16 %v136
  %v582 = vunpack.c.h.b16 %v136
  %v583 = vunpack.c.l.b16 %v137
  %v584 = vunpack.c.h.b16 %v137
  %v585 = vunpack.c.l.b16 %v138
  %v586 = vunpack.c.h.b16 %v138
  %v587 = vunpack.c.l.b16 %v139
  %v588 = vunpack.c.h.b16 %v139
  %v589 = vunpack.c.l.b16 %v140
  %v590 = vunpack.c.h.b16 %v140
  %v591 = vunpack.c.l.b16 %v141
  %v592 = vunpack.c.h.b16 %v141
  %v593 = vunpack.c.l.b16 %v142
  %v594 = vunpack.c.h.b16 %v142
  %v595 = vunpack.c.l.b16 %v143
  %v596 = vunpack.c.h.b16 %v143
  %v597 = vunpack.c.l.b16 %v144
  %v598 = vunpack.c.h.b16 %v144
  %v599 = vunpack.c.l.b16 %v145
  %v600 = vunpack.c.h.b16 %v145
  %v601 = vunpack.c.l.b16 %v146
  %v602 = vunpack.c.h.b16 %v146
  %v603 = vunpack.c.l.b16 %v147
  %v604 = vunpack.c.h.b16 %v147
  %v605 = vunpack.c.l.b16 %v148
  %v606 = vunpack.c.h.b16 %v148
  %v607 = vunpack.c.l.b16 %v149
  %v608 = vunpack.c.h.b16 %v149
  %v609 = vunpack.c.l.b16 %v150
  %v610 = vunpack.c.h.b16 %v150
  %v611 = vunpack.c.l.b16 %v151
  %v612 = vunpack.c.h.b16 %v151
  %v613 = vunpack.c.l.b16 %v152
  %v614 = vunpack.c.h.b16 %v152
  %v615 = vunpack.c.l.b16 %v153
  %v616 = vunpack.c.h.b16 %v153
  %v617 = vunpack.c.l.b16 %v154
  %v618 = vunpack.c.h.b16 %v154
  %v619 = vpack.c.b16 %v367, %v363
  %v620 = vpack.c.b16 %v368, %v364
  %v621 = vpack.c.b16 %v369, %v365
  %v622 = vpack.c.b16 %v370, %v366
  %v623 = vpack.c.b16 %v375, %v371
  %v624 = vpack.c.b16 %v376, %v372
  %v625 = vpack.c.b16 %v377, %v373
  %v626 = vpack.c.b16 %v378, %v374
  %v627 = vpack.c.b16 %v383, %v379
  %v628 = vpack.c.b16 %v384, %v380
  %v629 = vpack.c.b16 %v385, %v381
  %v630 = vpack.c.b16 %v386, %v382
  %v631 = vpack.c.b16 %v391, %v387
  %v632 = vpack.c.b16 %v392, %v388
  %v633 = vpack.c.b16 %v393, %v389
  %v634 = vpack.c.b16 %v394, %v390
  %v635 = vpack.c.b16 %v399, %v395
  %v636 = vpack.c.b16 %v400, %v396
  %v637 = vpack.c.b16 %v401, %v397
  %v638 = vpack.c.b16 %v402, %v398
  %v639 = vpack.c.b16 %v407, %v403
  %v640 = vpack.c.b16 %v408, %v404
  %v641 = vpack.c.b16 %v409, %v405
  %v642 = vpack.c.b16 %v410, %v406
  %v643 = vpack.c.b16 %v415, %v411
  %v644 = vpack.c.b16 %v416, %v412
  %v645 = vpack.c.b16 %v417, %v413
  %v646 = vpack.c.b16 %v418, %v414
  %v647 = vpack.c.b16 %v423, %v419
  %v648 = vpack.c.b16 %v424, %v420
  %v649 = vpack.c.b16 %v425, %v421
  %v650 = vpack.c.b16 %v426, %v422
  %v651 = vpack.c.b16 %v431, %v427
  %v652 = vpack.c.b16 %v432, %v428
  %v653 = vpack.c.b16 %v433, %v429
  %v654 = vpack.c.b16 %v434, %v430
  %v655 = vpack.c.b16 %v439, %v435
  %v656 = vpack.c.b16 %v440, %v436
  %v657 = vpack.c.b16 %v441, %v437
  %v658 = vpack.c.b16 %v442, %v438
  %v659 = vpack.c.b16 %v447, %v443
  %v660 = vpack.c.b16 %v448, %v444
  %v661 = vpack.c.b16 %v449, %v445
  %v662 = vpack.c.b16 %v450, %v446
  %v663 = vpack.c.b16 %v455, %v451
  %v664 = vpack.c.b16 %v456, %v452
  %v665 = vpack.c.b16 %v457, %v453
  %v666 = vpack.c.b16 %v458, %v454
  %v667 = vpack.c.b16 %v463, %v459
  %v668 = vpack.c.b16 %v464, %v460
  %v669 = vpack.c.b16 %v465, %v461
  %v670 = vpack.c.b16 %v466, %v462
  %v671 = vpack.c.b16 %v471, %v467
  %v672 = vpack.c.b16 %v472, %v468
  %v673 = vpack.c.b16 %v473, %v469
  %v674 = vpack.c.b16 %v474, %v470
  %v675 = vpack.c.b16 %v479, %v475
  %v676 = vpack.c.b16 %v480, %v476
  %v677 = vpack.c.b16 %v481, %v477
  %v678 = vpack.c.b16 %v482, %v478
  %v679 = vpack.c.b16 %v487, %v483
  %v680 = vpack.c.b16 %v488, %v484
  %v681 = vpack.c.b16 %v489, %v485
  %v682 = vpack.c.b16 %v490, %v486
  %v683 = vpack.c.b16 %v495, %v491
  %v684 = vpack.c.b16 %v496, %v492
  %v685 = vpack.c.b16 %v497, %v493
  %v686 = vpack.c.b16 %v498, %v494
  %v687 = vpack.c.b16 %v503, %v499
  %v688 = vpack.c.b16 %v504, %v500
  %v689 = vpack.c.b16 %v505, %v501
  %v690 = vpack.c.b16 %v506, %v502
  %v691 = vpack.c.b16 %v511, %v507
  %v692 = vpack.c.b16 %v512, %v508
  %v693 = vpack.c.b16 %v513, %v509
  %v694 = vpack.c.b16 %v514, %v510
  %v695 = vpack.c.b16 %v519, %v515
  %v696 = vpack.c.b16 %v520, %v516
  %v697 = vpack.c.b16 %v521, %v517
  %v698 = vpack.c.b16 %v522, %v518
  %v699 = vpack.c.b16 %v527, %v523
  %v700 = vpack.c.b16 %v528, %v524
  %v701 = vpack.c.b16 %v529, %v525
  %v702 = vpack.c.b16 %v530, %v526
  %v703 = vpack.c.b16 %v535, %v531
  %v704 = vpack.c.b16 %v536, %v532
  %v705 = vpack.c.b16 %v537, %v533
  %v706 = vpack.c.b16 %v538, %v534
  %v707 = vpack.c.b16 %v543, %v539
  %v708 = vpack.c.b16 %v544, %v540
  %v709 = vpack.c.b16 %v545, %v541
  %v710 = vpack.c.b16 %v546, %v542
  %v711 = vpack.c.b16 %v551, %v547
  %v712 = vpack.c.b16 %v552, %v548
  %v713 = vpack.c.b16 %v553, %v549
  %v714 = vpack.c.b16 %v554, %v550
  %v715 = vpack.c.b16 %v559, %v555
  %v716 = vpack.c.b16 %v560, %v556
  %v717 = vpack.c.b16 %v561, %v557
  %v718 = vpack.c.b16 %v562, %v558
  %v719 = vpack.c.b16 %v567, %v563
  %v720 = vpack.c.b16 %v568, %v564
  %v721 = vpack.c.b16 %v569, %v565
  %v722 = vpack.c.b16 %v570, %v566
  %v723 = vpack.c.b16 %v575, %v571
  %v724 = vpack.c.b16 %v576, %v572
  %v725 = vpack.c.b16 %v577, %v573
  %v726 = vpack.c.b16 %v578, %v574
  %v727 = vpack.c.b16 %v583, %v579
  %v728 = vpack.c.b16 %v584, %v580
  %v729 = vpack.c.b16 %v585, %v581
  %v730 = vpack.c.b16 %v586, %v582
  %v731 = vpack.c.b16 %v591, %v587
  %v732 = vpack.c.b16 %v592, %v588
  %v733 = vpack.c.b16 %v593, %v589
  %v734 = vpack.c.b16 %v594, %v590
  %v735 = vpack.c.b16 %v599, %v595
  %v736 = vpack.c.b16 %v600, %v596
  %v737 = vpack.c.b16 %v601, %v597
  %v738 = vpack.c.b16 %v602, %v598
  %v739 = vpack.c.b16 %v607, %v603
  %v740 = vpack.c.b16 %v608, %v604
  %v741 = vpack.c.b16 %v609, %v605
  %v742 = vpack.c.b16 %v610, %v606
  %v743 = vpack.c.b16 %v615, %v611
  %v744 = vpack.c.b16 %v616, %v612
  %v745 = vpack.c.b16 %v617, %v613
  %v746 = vpack.c.b16 %v618, %v614
  %875 = vmatprep.subr.bf16.mxu0 %v648
  %876 = vmatpush1.bf16.msra.mxu0 %v647
  %877 = vmatprep.subr.bf16.mxu0 %v644
  %878 = vmatpush1.bf16.msra.mxu0 %v643
  %879 = vmatprep.subr.bf16.mxu0 %v640
  %880 = vmatpush1.bf16.msra.mxu0 %v639
  %881 = vmatprep.subr.bf16.mxu0 %v636
  %882 = vmatpush1.bf16.msra.mxu0 %v635
  %883 = vmatprep.subr.bf16.mxu0 %v632
  %884 = vmatpush1.bf16.msra.mxu0 %v631
  %885 = vmatprep.subr.bf16.mxu0 %v628
  %886 = vmatpush1.bf16.msra.mxu0 %v627
  %887 = vmatprep.subr.bf16.mxu0 %v624
  %888 = vmatpush1.bf16.msra.mxu0 %v623
  %889 = vmatprep.subr.bf16.mxu0 %v620
  %890 = vmatpush1.bf16.msra.mxu0 %v619
  %891 = vmatprep.subr.bf16.mxu0 %v680
  %892 = vmatpush2.bf16.msra.mxu0 %v679
  %893 = vmatprep.subr.bf16.mxu0 %v676
  %894 = vmatpush2.bf16.msra.mxu0 %v675
  %895 = vmatprep.subr.bf16.mxu0 %v672
  %896 = vmatpush2.bf16.msra.mxu0 %v671
  %897 = vmatprep.subr.bf16.mxu0 %v668
  %898 = vmatpush2.bf16.msra.mxu0 %v667
  %899 = vmatprep.subr.bf16.mxu0 %v664
  %900 = vmatpush2.bf16.msra.mxu0 %v663
  %901 = vmatprep.subr.bf16.mxu0 %v660
  %902 = vmatpush2.bf16.msra.mxu0 %v659
  %903 = vmatprep.subr.bf16.mxu0 %v656
  %904 = vmatpush2.bf16.msra.mxu0 %v655
  %905 = vmatprep.subr.bf16.mxu0 %v652
  %906 = vmatpush2.bf16.msra.mxu0 %v651
  %907 = vmatprep.mubr.bf16.mxu0 %v204
  %908 = vmatmul.mubr.bf16.gmra.mxu0 %v203
  %v909 = vpop.f32.mrf.mxu0
  %v910 = vadd.f32 0.0, %v909
  %v911 = vpop.f32.mrf.mxu0
  %v912 = vadd.f32 0.0, %v911
  %v913 = vpop.f32.mrf.mxu0
  %v914 = vadd.f32 0.0, %v913
  %v915 = vpop.f32.mrf.mxu0
  %v916 = vadd.f32 0.0, %v915
  %917 = vmatprep.mubr.bf16.mxu0 %v208
  %918 = vmatmul.mubr.bf16.gmra.mxu0 %v207
  %v919 = vpop.f32.mrf.mxu0
  %v920 = vadd.f32 0.0, %v919
  %v921 = vpop.f32.mrf.mxu0
  %v922 = vadd.f32 0.0, %v921
  %v923 = vpop.f32.mrf.mxu0
  %v924 = vadd.f32 0.0, %v923
  %v925 = vpop.f32.mrf.mxu0
  %v926 = vadd.f32 0.0, %v925
  %927 = vmatprep.mubr.bf16.mxu0 %v212
  %928 = vmatmul.mubr.bf16.gmra.mxu0 %v211
  %v929 = vpop.f32.mrf.mxu0
  %v930 = vadd.f32 0.0, %v929
  %v931 = vpop.f32.mrf.mxu0
  %v932 = vadd.f32 0.0, %v931
  %v933 = vpop.f32.mrf.mxu0
  %v934 = vadd.f32 0.0, %v933
  %v935 = vpop.f32.mrf.mxu0
  %v936 = vadd.f32 0.0, %v935
  %937 = vmatprep.mubr.bf16.mxu0 %v216
  %938 = vmatmul.mubr.bf16.gmra.mxu0 %v215
  %v939 = vpop.f32.mrf.mxu0
  %v940 = vadd.f32 0.0, %v939
  %v941 = vpop.f32.mrf.mxu0
  %v942 = vadd.f32 0.0, %v941
  %v943 = vpop.f32.mrf.mxu0
  %v944 = vadd.f32 0.0, %v943
  %v945 = vpop.f32.mrf.mxu0
  %v946 = vadd.f32 0.0, %v945
  %947 = vdwg.mxu0
  %948 = vmatprep.subr.bf16.mxu0 %v712
  %949 = vmatpush1.bf16.msra.mxu0 %v711
  %950 = vmatprep.subr.bf16.mxu0 %v708
  %951 = vmatpush1.bf16.msra.mxu0 %v707
  %952 = vmatprep.subr.bf16.mxu0 %v704
  %953 = vmatpush1.bf16.msra.mxu0 %v703
  %954 = vmatprep.subr.bf16.mxu0 %v700
  %955 = vmatpush1.bf16.msra.mxu0 %v699
  %956 = vmatprep.subr.bf16.mxu0 %v696
  %957 = vmatpush1.bf16.msra.mxu0 %v695
  %958 = vmatprep.subr.bf16.mxu0 %v692
  %959 = vmatpush1.bf16.msra.mxu0 %v691
  %960 = vmatprep.subr.bf16.mxu0 %v688
  %961 = vmatpush1.bf16.msra.mxu0 %v687
  %962 = vmatprep.subr.bf16.mxu0 %v684
  %963 = vmatpush1.bf16.msra.mxu0 %v683
  %964 = vmatprep.subr.bf16.mxu0 %v744
  %965 = vmatpush2.bf16.msra.mxu0 %v743
  %966 = vmatprep.subr.bf16.mxu0 %v740
  %967 = vmatpush2.bf16.msra.mxu0 %v739
  %968 = vmatprep.subr.bf16.mxu0 %v736
  %969 = vmatpush2.bf16.msra.mxu0 %v735
  %970 = vmatprep.subr.bf16.mxu0 %v732
  %971 = vmatpush2.bf16.msra.mxu0 %v731
  %972 = vmatprep.subr.bf16.mxu0 %v728
  %973 = vmatpush2.bf16.msra.mxu0 %v727
  %974 = vmatprep.subr.bf16.mxu0 %v724
  %975 = vmatpush2.bf16.msra.mxu0 %v723
  %976 = vmatprep.subr.bf16.mxu0 %v720
  %977 = vmatpush2.bf16.msra.mxu0 %v719
  %978 = vmatprep.subr.bf16.mxu0 %v716
  %979 = vmatpush2.bf16.msra.mxu0 %v715
  %980 = vmatprep.mubr.bf16.mxu0 %v206
  %981 = vmatmul.mubr.bf16.gmra.mxu0 %v205
  %v982 = vpop.f32.mrf.mxu0
  %v983 = vadd.f32 %v910, %v982
  %v984 = vpop.f32.mrf.mxu0
  %v985 = vadd.f32 %v912, %v984
  %v986 = vpop.f32.mrf.mxu0
  %v987 = vadd.f32 %v914, %v986
  %v988 = vpop.f32.mrf.mxu0
  %v989 = vadd.f32 %v916, %v988
  %990 = vmatprep.mubr.bf16.mxu0 %v210
  %991 = vmatmul.mubr.bf16.gmra.mxu0 %v209
  %v992 = vpop.f32.mrf.mxu0
  %v993 = vadd.f32 %v920, %v992
  %v994 = vpop.f32.mrf.mxu0
  %v995 = vadd.f32 %v922, %v994
  %v996 = vpop.f32.mrf.mxu0
  %v997 = vadd.f32 %v924, %v996
  %v998 = vpop.f32.mrf.mxu0
  %v999 = vadd.f32 %v926, %v998
  %1000 = vmatprep.mubr.bf16.mxu0 %v214
  %1001 = vmatmul.mubr.bf16.gmra.mxu0 %v213
  %v1002 = vpop.f32.mrf.mxu0
  %v1003 = vadd.f32 %v930, %v1002
  %v1004 = vpop.f32.mrf.mxu0
  %v1005 = vadd.f32 %v932, %v1004
  %v1006 = vpop.f32.mrf.mxu0
  %v1007 = vadd.f32 %v934, %v1006
  %v1008 = vpop.f32.mrf.mxu0
  %v1009 = vadd.f32 %v936, %v1008
  %1010 = vmatprep.mubr.bf16.mxu0 %v218
  %1011 = vmatmul.mubr.bf16.gmra.mxu0 %v217
  %v1012 = vpop.f32.mrf.mxu0
  %v1013 = vadd.f32 %v940, %v1012
  %v1014 = vpop.f32.mrf.mxu0
  %v1015 = vadd.f32 %v942, %v1014
  %v1016 = vpop.f32.mrf.mxu0
  %v1017 = vadd.f32 %v944, %v1016
  %v1018 = vpop.f32.mrf.mxu0
  %v1019 = vadd.f32 %v946, %v1018
  %1020 = vdwg.mxu0
  %1021 = vmatprep.subr.bf16.mxu0 %v650
  %1022 = vmatpush1.bf16.msra.mxu0 %v649
  %1023 = vmatprep.subr.bf16.mxu0 %v646
  %1024 = vmatpush1.bf16.msra.mxu0 %v645
  %1025 = vmatprep.subr.bf16.mxu0 %v642
  %1026 = vmatpush1.bf16.msra.mxu0 %v641
  %1027 = vmatprep.subr.bf16.mxu0 %v638
  %1028 = vmatpush1.bf16.msra.mxu0 %v637
  %1029 = vmatprep.subr.bf16.mxu0 %v634
  %1030 = vmatpush1.bf16.msra.mxu0 %v633
  %1031 = vmatprep.subr.bf16.mxu0 %v630
  %1032 = vmatpush1.bf16.msra.mxu0 %v629
  %1033 = vmatprep.subr.bf16.mxu0 %v626
  %1034 = vmatpush1.bf16.msra.mxu0 %v625
  %1035 = vmatprep.subr.bf16.mxu0 %v622
  %1036 = vmatpush1.bf16.msra.mxu0 %v621
  %1037 = vmatprep.subr.bf16.mxu0 %v682
  %1038 = vmatpush2.bf16.msra.mxu0 %v681
  %1039 = vmatprep.subr.bf16.mxu0 %v678
  %1040 = vmatpush2.bf16.msra.mxu0 %v677
  %1041 = vmatprep.subr.bf16.mxu0 %v674
  %1042 = vmatpush2.bf16.msra.mxu0 %v673
  %1043 = vmatprep.subr.bf16.mxu0 %v670
  %1044 = vmatpush2.bf16.msra.mxu0 %v669
  %1045 = vmatprep.subr.bf16.mxu0 %v666
  %1046 = vmatpush2.bf16.msra.mxu0 %v665
  %1047 = vmatprep.subr.bf16.mxu0 %v662
  %1048 = vmatpush2.bf16.msra.mxu0 %v661
  %1049 = vmatprep.subr.bf16.mxu0 %v658
  %1050 = vmatpush2.bf16.msra.mxu0 %v657
  %1051 = vmatprep.subr.bf16.mxu0 %v654
  %1052 = vmatpush2.bf16.msra.mxu0 %v653
  %1053 = vmatprep.mubr.bf16.mxu0 %v204
  %1054 = vmatmul.mubr.bf16.gmra.mxu0 %v203
  %v1055 = vpop.f32.mrf.mxu0
  %v1056 = vadd.f32 0.0, %v1055
  %v1057 = vpop.f32.mrf.mxu0
  %v1058 = vadd.f32 0.0, %v1057
  %v1059 = vpop.f32.mrf.mxu0
  %v1060 = vadd.f32 0.0, %v1059
  %v1061 = vpop.f32.mrf.mxu0
  %v1062 = vadd.f32 0.0, %v1061
  %1063 = vmatprep.mubr.bf16.mxu0 %v208
  %1064 = vmatmul.mubr.bf16.gmra.mxu0 %v207
  %v1065 = vpop.f32.mrf.mxu0
  %v1066 = vadd.f32 0.0, %v1065
  %v1067 = vpop.f32.mrf.mxu0
  %v1068 = vadd.f32 0.0, %v1067
  %v1069 = vpop.f32.mrf.mxu0
  %v1070 = vadd.f32 0.0, %v1069
  %v1071 = vpop.f32.mrf.mxu0
  %v1072 = vadd.f32 0.0, %v1071
  %1073 = vmatprep.mubr.bf16.mxu0 %v212
  %1074 = vmatmul.mubr.bf16.gmra.mxu0 %v211
  %v1075 = vpop.f32.mrf.mxu0
  %v1076 = vadd.f32 0.0, %v1075
  %v1077 = vpop.f32.mrf.mxu0
  %v1078 = vadd.f32 0.0, %v1077
  %v1079 = vpop.f32.mrf.mxu0
  %v1080 = vadd.f32 0.0, %v1079
  %v1081 = vpop.f32.mrf.mxu0
  %v1082 = vadd.f32 0.0, %v1081
  %1083 = vmatprep.mubr.bf16.mxu0 %v216
  %1084 = vmatmul.mubr.bf16.gmra.mxu0 %v215
  %v1085 = vpop.f32.mrf.mxu0
  %v1086 = vadd.f32 0.0, %v1085
  %v1087 = vpop.f32.mrf.mxu0
  %v1088 = vadd.f32 0.0, %v1087
  %v1089 = vpop.f32.mrf.mxu0
  %v1090 = vadd.f32 0.0, %v1089
  %v1091 = vpop.f32.mrf.mxu0
  %v1092 = vadd.f32 0.0, %v1091
  %1093 = vdwg.mxu0
  %1094 = vmatprep.subr.bf16.mxu0 %v714
  %1095 = vmatpush1.bf16.msra.mxu0 %v713
  %1096 = vmatprep.subr.bf16.mxu0 %v710
  %1097 = vmatpush1.bf16.msra.mxu0 %v709
  %1098 = vmatprep.subr.bf16.mxu0 %v706
  %1099 = vmatpush1.bf16.msra.mxu0 %v705
  %1100 = vmatprep.subr.bf16.mxu0 %v702
  %1101 = vmatpush1.bf16.msra.mxu0 %v701
  %1102 = vmatprep.subr.bf16.mxu0 %v698
  %1103 = vmatpush1.bf16.msra.mxu0 %v697
  %1104 = vmatprep.subr.bf16.mxu0 %v694
  %1105 = vmatpush1.bf16.msra.mxu0 %v693
  %1106 = vmatprep.subr.bf16.mxu0 %v690
  %1107 = vmatpush1.bf16.msra.mxu0 %v689
  %1108 = vmatprep.subr.bf16.mxu0 %v686
  %1109 = vmatpush1.bf16.msra.mxu0 %v685
  %1110 = vmatprep.subr.bf16.mxu0 %v746
  %1111 = vmatpush2.bf16.msra.mxu0 %v745
  %1112 = vmatprep.subr.bf16.mxu0 %v742
  %1113 = vmatpush2.bf16.msra.mxu0 %v741
  %1114 = vmatprep.subr.bf16.mxu0 %v738
  %1115 = vmatpush2.bf16.msra.mxu0 %v737
  %1116 = vmatprep.subr.bf16.mxu0 %v734
  %1117 = vmatpush2.bf16.msra.mxu0 %v733
  %1118 = vmatprep.subr.bf16.mxu0 %v730
  %1119 = vmatpush2.bf16.msra.mxu0 %v729
  %1120 = vmatprep.subr.bf16.mxu0 %v726
  %1121 = vmatpush2.bf16.msra.mxu0 %v725
  %1122 = vmatprep.subr.bf16.mxu0 %v722
  %1123 = vmatpush2.bf16.msra.mxu0 %v721
  %1124 = vmatprep.subr.bf16.mxu0 %v718
  %1125 = vmatpush2.bf16.msra.mxu0 %v717
  %1126 = vmatprep.mubr.bf16.mxu0 %v206
  %1127 = vmatmul.mubr.bf16.gmra.mxu0 %v205
  %v1128 = vpop.f32.mrf.mxu0
  %v1129 = vadd.f32 %v1056, %v1128
  %v1130 = vpop.f32.mrf.mxu0
  %v1131 = vadd.f32 %v1058, %v1130
  %v1132 = vpop.f32.mrf.mxu0
  %v1133 = vadd.f32 %v1060, %v1132
  %v1134 = vpop.f32.mrf.mxu0
  %v1135 = vadd.f32 %v1062, %v1134
  %1136 = vmatprep.mubr.bf16.mxu0 %v210
  %1137 = vmatmul.mubr.bf16.gmra.mxu0 %v209
  %v1138 = vpop.f32.mrf.mxu0
  %v1139 = vadd.f32 %v1066, %v1138
  %v1140 = vpop.f32.mrf.mxu0
  %v1141 = vadd.f32 %v1068, %v1140
  %v1142 = vpop.f32.mrf.mxu0
  %v1143 = vadd.f32 %v1070, %v1142
  %v1144 = vpop.f32.mrf.mxu0
  %v1145 = vadd.f32 %v1072, %v1144
  %1146 = vmatprep.mubr.bf16.mxu0 %v214
  %1147 = vmatmul.mubr.bf16.gmra.mxu0 %v213
  %v1148 = vpop.f32.mrf.mxu0
  %v1149 = vadd.f32 %v1076, %v1148
  %v1150 = vpop.f32.mrf.mxu0
  %v1151 = vadd.f32 %v1078, %v1150
  %v1152 = vpop.f32.mrf.mxu0
  %v1153 = vadd.f32 %v1080, %v1152
  %v1154 = vpop.f32.mrf.mxu0
  %v1155 = vadd.f32 %v1082, %v1154
  %1156 = vmatprep.mubr.bf16.mxu0 %v218
  %1157 = vmatmul.mubr.bf16.gmra.mxu0 %v217
  %v1158 = vpop.f32.mrf.mxu0
  %v1159 = vadd.f32 %v1086, %v1158
  %v1160 = vpop.f32.mrf.mxu0
  %v1161 = vadd.f32 %v1088, %v1160
  %v1162 = vpop.f32.mrf.mxu0
  %v1163 = vadd.f32 %v1090, %v1162
  %v1164 = vpop.f32.mrf.mxu0
  %v1165 = vadd.f32 %v1092, %v1164
  %1166 = vdwg.mxu0
  %1167 = vst [vmem:[%s2] sm:$0xff] %v983
  %1168 = vst [vmem:[%s2 + $0x8] sm:$0xff] %v985
  %1169 = vst [vmem:[%s2 + $0x10] sm:$0xff] %v1129
  %1170 = vst [vmem:[%s2 + $0x18] sm:$0xff] %v1131
  %1171 = vst [vmem:[%s2 + $0x20] sm:$0xff] %v987
  %1172 = vst [vmem:[%s2 + $0x28] sm:$0xff] %v989
  %1173 = vst [vmem:[%s2 + $0x30] sm:$0xff] %v1133
  %1174 = vst [vmem:[%s2 + $0x38] sm:$0xff] %v1135
  %1175 = vst [vmem:[%s2 + $0x40] sm:$0xff] %v993
  %1176 = vst [vmem:[%s2 + $0x48] sm:$0xff] %v995
  %1177 = vst [vmem:[%s2 + $0x50] sm:$0xff] %v1139
  %1178 = vst [vmem:[%s2 + $0x58] sm:$0xff] %v1141
  %1179 = vst [vmem:[%s2 + $0x60] sm:$0xff] %v997
  %1180 = vst [vmem:[%s2 + $0x68] sm:$0xff] %v999
  %1181 = vst [vmem:[%s2 + $0x70] sm:$0xff] %v1143
  %1182 = vst [vmem:[%s2 + $0x78] sm:$0xff] %v1145
  %1183 = vst [vmem:[%s2 + $0x80] sm:$0xff] %v1003
  %1184 = vst [vmem:[%s2 + $0x88] sm:$0xff] %v1005
  %1185 = vst [vmem:[%s2 + $0x90] sm:$0xff] %v1149
  %1186 = vst [vmem:[%s2 + $0x98] sm:$0xff] %v1151
  %1187 = vst [vmem:[%s2 + $0xa0] sm:$0xff] %v1007
  %1188 = vst [vmem:[%s2 + $0xa8] sm:$0xff] %v1009
  %1189 = vst [vmem:[%s2 + $0xb0] sm:$0xff] %v1153
  %1190 = vst [vmem:[%s2 + $0xb8] sm:$0xff] %v1155
  %1191 = vst [vmem:[%s2 + $0xc0] sm:$0xff] %v1013
  %1192 = vst [vmem:[%s2 + $0xc8] sm:$0xff] %v1015
  %1193 = vst [vmem:[%s2 + $0xd0] sm:$0xff] %v1159
  %1194 = vst [vmem:[%s2 + $0xd8] sm:$0xff] %v1161
  %1195 = vst [vmem:[%s2 + $0xe0] sm:$0xff] %v1017
  %1196 = vst [vmem:[%s2 + $0xe8] sm:$0xff] %v1019
  %1197 = vst [vmem:[%s2 + $0xf0] sm:$0xff] %v1163
  %1198 = vst [vmem:[%s2 + $0xf8] sm:$0xff] %v1165
  // Predicated region
  $region10: #{rel_pos_emb_2d.1} parent=0 // pred_check
    _
  $region11: #{rel_pos_emb_2d.1} parent=0 // pred_check_branch
    %1200 = sbr.rel (0) target = $region13
  $region12: #{rel_pos_emb_2d.1} parent=0 // pred_region
    _
  $region13: #{rel_pos_emb_2d.1} parent=0 // pred_fallthru
    _
  // Predicated region
  $region14: #{rel_pos_emb_2d.1} parent=0 // pred_check
    _
  $region15: #{rel_pos_emb_2d.1} parent=0 // pred_check_branch
    %1202 = sbr.rel (0) target = $region17
  $region16: #{rel_pos_emb_2d.1} parent=0 // pred_region
    _
  $region17: #{rel_pos_emb_2d.1} parent=0 // pred_fallthru
    _

</llo_original>
